<compile_context>
chip_gen: v7x
topology: tpu7x:2x2x1
jax: 0.10.0
libtpu: 0.0.40
codegen_flags: <defaults>
</compile_context>

<pallas_src>
import math
import functools

import jax
import jax.numpy as jnp
from jax.experimental import pallas as pl
from jax.experimental.pallas import tpu as pltpu

_VMEM_LIMIT = 64 * 1024 * 1024          # explicit scoped-VMEM budget (headroom)
_SEQ_TILE = 256                         # targets 256-wide MXU on v6e/v7x
_VOCAB_TILE = 2048                      # streamed LM-head weight tile (lanes)


# ------------------------------------------------------------------ helpers --
def _layernorm(v, g, b, eps=1e-5):
    """LayerNorm in f32 (statistics stay f32 regardless of matmul dtype)."""
    v = v.astype(jnp.float32)
    mu = jnp.mean(v, axis=-1, keepdims=True)
    var = jnp.mean((v - mu) ** 2, axis=-1, keepdims=True)
    return (v - mu) * jax.lax.rsqrt(var + eps) * g + b


def _pick_tile(n, preferred):
    """Largest clean tile: `preferred` if it divides n, else the full extent."""
    return preferred if (n % preferred == 0) else n


def _ws(shape):
    """Full-array BlockSpec for a weight/bias that is constant over the grid."""
    n = len(shape)
    return pl.BlockSpec(shape, lambda *_, _n=n: (0,) * _n)


# ----------------------------------------------------------- Pallas kernels --
def qkv_kernel(n_heads, x_ref, g1_ref, b1_ref, wqkv_ref, bqkv_ref,
               q_ref, k_ref, v_ref):
    """ln1 + fused QKV projection; emits q/k/v in (H, TS, hd) bf16 layout."""
    x = x_ref[...]                                   # (TS, E) f32
    TS, E = x.shape
    hd = E // n_heads
    h = _layernorm(x, g1_ref[...], b1_ref[...]).astype(jnp.bfloat16)
    qkv = jnp.dot(h, wqkv_ref[...],
                  preferred_element_type=jnp.float32) + bqkv_ref[...]

    def head_split(i):
        t = qkv[:, i * E:(i + 1) * E].astype(jnp.bfloat16)
        return t.reshape(TS, n_heads, hd).transpose(1, 0, 2)   # (H, TS, hd)

    q_ref[...] = head_split(0)
    k_ref[...] = head_split(1)
    v_ref[...] = head_split(2)


def flash_attn_kernel(q_ref, k_ref, v_ref, o_ref, m_sc, l_sc, acc_sc):
    """Causal flash attention: online softmax over k-tiles (grid axis 2)."""
    qi = pl.program_id(1)
    ki = pl.program_id(2)
    H, TQ, hd = q_ref.shape
    TK = k_ref.shape[1]
    scale = 1.0 / math.sqrt(hd)                      # SDPA default scale

    @pl.when(ki == 0)
    def _init():
        m_sc[...] = jnp.full(m_sc.shape, -1e30, dtype=jnp.float32)
        l_sc[...] = jnp.zeros(l_sc.shape, dtype=jnp.float32)
        acc_sc[...] = jnp.zeros(acc_sc.shape, dtype=jnp.float32)

    # Skip k-tiles that are entirely above the causal diagonal.
    @pl.when(ki * TK <= qi * TQ + (TQ - 1))
    def _compute():
        q = q_ref[...]                               # (H, TQ, hd) bf16
        k = k_ref[...]                               # (H, TK, hd) bf16
        v = v_ref[...]
        s = jnp.einsum('hqd,hkd->hqk', q, k,
                       preferred_element_type=jnp.float32) * scale
        q_pos = qi * TQ + jax.lax.broadcasted_iota(jnp.int32, (TQ, TK), 0)
        k_pos = ki * TK + jax.lax.broadcasted_iota(jnp.int32, (TQ, TK), 1)
        s = jnp.where((q_pos >= k_pos)[None, :, :], s, -1e30)

        m_prev = m_sc[...]                           # (H, TQ)
        m_new = jnp.maximum(m_prev, jnp.max(s, axis=-1))
        alpha = jnp.exp(m_prev - m_new)
        p = jnp.exp(s - m_new[:, :, None])
        l_sc[...] = alpha * l_sc[...] + jnp.sum(p, axis=-1)
        acc_sc[...] = alpha[:, :, None] * acc_sc[...] + jnp.einsum(
            'hqk,hkd->hqd', p.astype(jnp.bfloat16), v,
            preferred_element_type=jnp.float32)
        m_sc[...] = m_new

    @pl.when(ki == pl.num_programs(2) - 1)
    def _finalize():
        inv = pl.reciprocal(l_sc[...], approx=True)          # EUP slot
        out = acc_sc[...] * inv[:, :, None]                  # (H, TQ, hd) f32
        o_ref[...] = out.transpose(1, 0, 2).reshape(TQ, H * hd).astype(o_ref.dtype)


def post_attn_kernel(x_ref, a_ref, wp_ref, bp_ref, g2_ref, b2_ref,
                     w1_ref, bf1_ref, w2_ref, bf2_ref, o_ref):
    """attn out-proj + residual + ln2 + GELU MLP + residual (per seq tile)."""
    x = x_ref[...]                                   # (TS, E) f32 residual
    a = a_ref[...]                                   # (TS, E) bf16 attn output
    proj = jnp.dot(a, wp_ref[...],
                   preferred_element_type=jnp.float32) + bp_ref[...]
    x = x + proj                                     # dropout -> identity (eval)

    h = _layernorm(x, g2_ref[...], b2_ref[...]).astype(jnp.bfloat16)
    ff = jnp.dot(h, w1_ref[...],
                 preferred_element_type=jnp.float32) + bf1_ref[...]
    ff = jax.nn.gelu(ff, approximate=False)          # exact erf GELU (nn.GELU)
    ff = jnp.dot(ff.astype(jnp.bfloat16), w2_ref[...],
                 preferred_element_type=jnp.float32) + bf2_ref[...]
    o_ref[...] = (x + ff).astype(o_ref.dtype)


def lm_head_kernel(x_ref, gf_ref, bf_ref, w_ref, b_ref, o_ref):
    """final LayerNorm + one streamed vocab tile of the tied LM head."""
    h = _layernorm(x_ref[...], gf_ref[...], bf_ref[...]).astype(jnp.bfloat16)
    o_ref[...] = (jnp.dot(h, w_ref[...], preferred_element_type=jnp.float32)
                  + b_ref[...]).astype(o_ref.dtype)


# ------------------------------------------------------------ call wrappers --
def run_qkv(x, g1, b1, wqkv, bqkv, n_heads, ts):
    B, S, E = x.shape
    H, hd = n_heads, E // n_heads
    act_spec = pl.BlockSpec((None, ts, E), lambda b, s: (b, s, 0))
    head_spec = pl.BlockSpec((None, H, ts, hd), lambda b, s: (b, 0, s, 0))
    out_sd = jax.ShapeDtypeStruct((B, H, S, hd), jnp.bfloat16)
    return pl.pallas_call(
        functools.partial(qkv_kernel, n_heads),
        out_shape=(out_sd, out_sd, out_sd),
        grid=(B, S // ts),
        in_specs=[act_spec, _ws(g1.shape), _ws(b1.shape),
                  _ws(wqkv.shape), _ws(bqkv.shape)],
        out_specs=(head_spec, head_spec, head_spec),
        compiler_params=pltpu.CompilerParams(
            dimension_semantics=("parallel", "parallel"),
            vmem_limit_bytes=_VMEM_LIMIT),
    )(x, g1, b1, wqkv, bqkv)


def run_flash_attention(q, k, v, tile):
    B, H, S, hd = q.shape
    E = H * hd
    q_spec = pl.BlockSpec((None, H, tile, hd), lambda b, qi, ki: (b, 0, qi, 0))
    kv_spec = pl.BlockSpec((None, H, tile, hd), lambda b, qi, ki: (b, 0, ki, 0))
    return pl.pallas_call(
        flash_attn_kernel,
        out_shape=jax.ShapeDtypeStruct((B, S, E), jnp.bfloat16),
        grid=(B, S // tile, S // tile),
        in_specs=[q_spec, kv_spec, kv_spec],
        out_specs=pl.BlockSpec((None, tile, E), lambda b, qi, ki: (b, qi, 0)),
        scratch_shapes=[
            pltpu.VMEM((H, tile), jnp.float32),        # running max
            pltpu.VMEM((H, tile), jnp.float32),        # running sum
            pltpu.VMEM((H, tile, hd), jnp.float32),    # output accumulator
        ],
        compiler_params=pltpu.CompilerParams(
            dimension_semantics=("parallel", "parallel", "arbitrary"),
            vmem_limit_bytes=_VMEM_LIMIT),
    )(q, k, v)


def run_post_attn(x, attn, blk, ts):
    B, S, E = x.shape
    weights = [blk['wproj'], blk['bproj'], blk['g2'], blk['b2'],
               blk['wff1'], blk['bff1'], blk['wff2'], blk['bff2']]
    act_spec = pl.BlockSpec((None, ts, E), lambda b, s: (b, s, 0))
    in_specs = [act_spec, act_spec] + [_ws(w.shape) for w in weights]
    return pl.pallas_call(
        post_attn_kernel,
        out_shape=jax.ShapeDtypeStruct((B, S, E), jnp.float32),
        grid=(B, S // ts),
        in_specs=in_specs,
        out_specs=act_spec,
        compiler_params=pltpu.CompilerParams(
            dimension_semantics=("parallel", "parallel"),
            vmem_limit_bytes=_VMEM_LIMIT),
    )(x, attn, *weights)


def run_lm_head(x, gf, bf, w_lm, b_vocab, tv=_VOCAB_TILE):
    B, S, E = x.shape
    V = w_lm.shape[1]
    TV = min(V, tv)
    n_tiles = pl.cdiv(V, TV)
    Vp = n_tiles * TV
    w, b = w_lm, b_vocab
    if Vp != V:                                       # pad vocab to tile multiple
        w = jnp.pad(w_lm, ((0, 0), (0, Vp - V)))
        b = jnp.pad(b_vocab, ((0, 0), (0, Vp - V)))
    logits = pl.pallas_call(
        lm_head_kernel,
        out_shape=jax.ShapeDtypeStruct((B, S, Vp), jnp.float32),
        grid=(B, Vp // TV),
        in_specs=[pl.BlockSpec((None, S, E), lambda bi, j: (bi, 0, 0)),
                  _ws(gf.shape), _ws(bf.shape),
                  pl.BlockSpec((E, TV), lambda bi, j: (0, j)),
                  pl.BlockSpec((1, TV), lambda bi, j: (0, j))],
        out_specs=pl.BlockSpec((None, S, TV), lambda bi, j: (bi, 0, j)),
        compiler_params=pltpu.CompilerParams(
            dimension_semantics=("parallel", "parallel"),
            vmem_limit_bytes=_VMEM_LIMIT),
    )(x, gf, bf, w, b)
    return logits[..., :V] if Vp != V else logits


# --------------------------------------------------------- parameter set-up --
def init_gpt2_params(key, n_embeddings, vocab_size, max_seq_len, n_blocks):
    std = 0.02
    E = n_embeddings
    k_wte, k_wpe, k_blocks = jax.random.split(key, 3)
    wte = std * jax.random.normal(k_wte, (vocab_size, E), jnp.float32)
    wpe = std * jax.random.normal(k_wpe, (max_seq_len, E), jnp.float32)

    blocks = []
    for i in range(n_blocks):
        kq, kp, k1, k2 = jax.random.split(jax.random.fold_in(k_blocks, i), 4)
        blocks.append(dict(
            g1=jnp.ones((1, E), jnp.float32), b1=jnp.zeros((1, E), jnp.float32),
            wqkv=(std * jax.random.normal(kq, (E, 3 * E))).astype(jnp.bfloat16),
            bqkv=jnp.zeros((1, 3 * E), jnp.float32),
            wproj=(std * jax.random.normal(kp, (E, E))).astype(jnp.bfloat16),
            bproj=jnp.zeros((1, E), jnp.float32),
            g2=jnp.ones((1, E), jnp.float32), b2=jnp.zeros((1, E), jnp.float32),
            wff1=(std * jax.random.normal(k1, (E, 4 * E))).astype(jnp.bfloat16),
            bff1=jnp.zeros((1, 4 * E), jnp.float32),
            wff2=(std * jax.random.normal(k2, (4 * E, E))).astype(jnp.bfloat16),
            bff2=jnp.zeros((1, E), jnp.float32),
        ))
    return dict(
        wte=wte, wpe=wpe, blocks=blocks,
        gf=jnp.ones((1, E), jnp.float32), bf=jnp.zeros((1, E), jnp.float32),
        # tied LM head (final_projection.weight is wte): stored pre-transposed
        # (E, V) in bf16 once, so it is never re-transposed per forward.
        w_lm=wte.T.astype(jnp.bfloat16),
        b_vocab=jnp.zeros((1, vocab_size), jnp.float32),
    )


# ------------------------------------------------------------- GPT2 forward --
def gpt2_forward(toks, params, n_heads, targets=None):
    B, S = toks.shape
    # embedding gather + positional add (plain-JAX glue, f32 residual stream)
    x = params['wte'][toks] + params['wpe'][jnp.arange(S)][None, :, :]

    ts = _pick_tile(S, _SEQ_TILE)
    for blk in params['blocks']:
        q, k, v = run_qkv(x, blk['g1'], blk['b1'], blk['wqkv'], blk['bqkv'],
                          n_heads, ts)
        attn = run_flash_attention(q, k, v, ts)
        x = run_post_attn(x, attn, blk, ts)

    logits = run_lm_head(x, params['gf'], params['bf'],
                         params['w_lm'], params['b_vocab'])
    loss = None
    if targets is not None:
        # TODO(synk): fuse log-softmax + cross-entropy into the tiled LM-head
        # kernel (per-vocab-tile running max/sum) for production; plain JAX here.
        logp = jax.nn.log_softmax(logits, axis=-1)
        loss = -jnp.mean(jnp.take_along_axis(logp, targets[..., None], axis=-1))
    return logits, loss


# ----------------------------------------------------------------------------
if __name__ == "__main__":
    n_embeddings = 32
    vocab_size = 64
    max_seq_len = 16
    n_blocks = 2
    n_heads = 4
    B, S = 2, 8

    key = jax.random.PRNGKey(0)
    k_params, k_toks = jax.random.split(key)
    params = init_gpt2_params(k_params, n_embeddings, vocab_size,
                              max_seq_len, n_blocks)
    toks = jax.random.randint(k_toks, (B, S), 0, vocab_size, dtype=jnp.int32)

    logits, loss = gpt2_forward(toks, params, n_heads)
    logits = jax.block_until_ready(logits)
    assert logits.shape == (B, S, vocab_size)
    assert logits.dtype == jnp.float32
    assert bool(jnp.all(jnp.isfinite(logits)))
    print("KERNEL_OK")
</pallas_src>

<mosaic_0001>
module attributes {stable_mosaic.version = 11 : i64} {
  func.func @qkv_kernel(%arg0: i32, %arg1: i32, %arg2: memref<1x8x32xf32, #tpu.memory_space<vmem>>, %arg3: memref<1x32xf32, #tpu.memory_space<vmem>>, %arg4: memref<1x32xf32, #tpu.memory_space<vmem>>, %arg5: memref<32x96xbf16, #tpu.memory_space<vmem>>, %arg6: memref<1x96xf32, #tpu.memory_space<vmem>>, %arg7: memref<1x4x8x8xbf16, #tpu.memory_space<vmem>>, %arg8: memref<1x4x8x8xbf16, #tpu.memory_space<vmem>>, %arg9: memref<1x4x8x8xbf16, #tpu.memory_space<vmem>>) attributes {dimension_semantics = [#tpu.dimension_semantics<parallel>, #tpu.dimension_semantics<parallel>], iteration_bounds = array<i64: 2, 1>, scalar_prefetch = 0 : i64, scratch_operands = 0 : i64, tpu.core_type = #tpu.core_type<tc>, window_params = [{transform_indices = @transform_0, window_bounds = array<i64: 1, 8, 32>}, {pipeline_mode = #tpu.pipeline_mode<synchronous>, transform_indices = @transform_1, window_bounds = array<i64: 1, 32>}, {pipeline_mode = #tpu.pipeline_mode<synchronous>, transform_indices = @transform_2, window_bounds = array<i64: 1, 32>}, {pipeline_mode = #tpu.pipeline_mode<synchronous>, transform_indices = @transform_3, window_bounds = array<i64: 32, 96>}, {pipeline_mode = #tpu.pipeline_mode<synchronous>, transform_indices = @transform_4, window_bounds = array<i64: 1, 96>}, {transform_indices = @transform_5, window_bounds = array<i64: 1, 4, 8, 8>}, {transform_indices = @transform_6, window_bounds = array<i64: 1, 4, 8, 8>}, {transform_indices = @transform_7, window_bounds = array<i64: 1, 4, 8, 8>}]} {
    %c0 = arith.constant 0 : index
    %c0_0 = arith.constant 0 : index
    %c0_1 = arith.constant 0 : index
    %0 = vector.load %arg2[%c0, %c0_0, %c0_1] : memref<1x8x32xf32, #tpu.memory_space<vmem>>, vector<1x8x32xf32>
    %1 = vector.shape_cast %0 : vector<1x8x32xf32> to vector<8x32xf32>
    %c0_2 = arith.constant 0 : index
    %c0_3 = arith.constant 0 : index
    %2 = vector.load %arg3[%c0_2, %c0_3] : memref<1x32xf32, #tpu.memory_space<vmem>>, vector<1x32xf32>
    %c0_4 = arith.constant 0 : index
    %c0_5 = arith.constant 0 : index
    %3 = vector.load %arg4[%c0_4, %c0_5] : memref<1x32xf32, #tpu.memory_space<vmem>>, vector<1x32xf32>
    %cst = arith.constant dense<0.000000e+00> : vector<8xf32>
    %4 = vector.multi_reduction <add>, %1, %cst [1] : vector<8x32xf32> to vector<8xf32>
    %5 = vector.shape_cast %4 : vector<8xf32> to vector<8x1xf32>
    %cst_6 = arith.constant 3.200000e+01 : f32
    %6 = vector.broadcast %cst_6 : f32 to vector<8x1xf32>
    %7 = arith.divf %5, %6 : vector<8x1xf32>
    %8 = vector.broadcast %7 : vector<8x1xf32> to vector<8x32xf32>
    %9 = arith.subf %1, %8 : vector<8x32xf32>
    %10 = arith.mulf %9, %9 : vector<8x32xf32>
    %cst_7 = arith.constant dense<0.000000e+00> : vector<8xf32>
    %11 = vector.multi_reduction <add>, %10, %cst_7 [1] : vector<8x32xf32> to vector<8xf32>
    %12 = vector.shape_cast %11 : vector<8xf32> to vector<8x1xf32>
    %cst_8 = arith.constant 3.200000e+01 : f32
    %13 = vector.broadcast %cst_8 : f32 to vector<8x1xf32>
    %14 = arith.divf %12, %13 : vector<8x1xf32>
    %15 = vector.broadcast %7 : vector<8x1xf32> to vector<8x32xf32>
    %16 = arith.subf %1, %15 : vector<8x32xf32>
    %cst_9 = arith.constant 9.99999974E-6 : f32
    %17 = vector.broadcast %cst_9 : f32 to vector<8x1xf32>
    %18 = arith.addf %14, %17 : vector<8x1xf32>
    %19 = math.rsqrt %18 : vector<8x1xf32>
    %20 = vector.broadcast %19 : vector<8x1xf32> to vector<8x32xf32>
    %21 = arith.mulf %16, %20 : vector<8x32xf32>
    %22 = vector.broadcast %2 : vector<1x32xf32> to vector<8x32xf32>
    %23 = arith.mulf %21, %22 : vector<8x32xf32>
    %24 = vector.broadcast %3 : vector<1x32xf32> to vector<8x32xf32>
    %25 = arith.addf %23, %24 : vector<8x32xf32>
    %26 = arith.truncf %25 : vector<8x32xf32> to vector<8x32xbf16>
    %c0_10 = arith.constant 0 : index
    %c0_11 = arith.constant 0 : index
    %27 = vector.load %arg5[%c0_10, %c0_11] : memref<32x96xbf16, #tpu.memory_space<vmem>>, vector<32x96xbf16>
    %cst_12 = arith.constant dense<0.000000e+00> : vector<8x96xf32>
    %28 = tpu.matmul %26, %27, %cst_12 {dimension_numbers = #tpu.dot_dimension_numbers<[1], [0], [0], [1], [0, 0, 1, 1], [], []>} : vector<8x32xbf16>, vector<32x96xbf16>, vector<8x96xf32> -> vector<8x96xf32>
    %c0_13 = arith.constant 0 : index
    %c0_14 = arith.constant 0 : index
    %29 = vector.load %arg6[%c0_13, %c0_14] : memref<1x96xf32, #tpu.memory_space<vmem>>, vector<1x96xf32>
    %30 = vector.broadcast %29 : vector<1x96xf32> to vector<8x96xf32>
    %31 = arith.addf %28, %30 : vector<8x96xf32>
    %32 = vector.extract_strided_slice %31 {offsets = [0, 0], sizes = [8, 32], strides = [1, 1]} : vector<8x96xf32> to vector<8x32xf32>
    %33 = arith.truncf %32 : vector<8x32xf32> to vector<8x32xbf16>
    %34 = vector.shape_cast %33 : vector<8x32xbf16> to vector<8x4x8xbf16>
    %35 = tpu.transpose %34, [1, 0, 2] : vector<8x4x8xbf16> -> vector<4x8x8xbf16>
    %c0_15 = arith.constant 0 : index
    %c0_16 = arith.constant 0 : index
    %c0_17 = arith.constant 0 : index
    %c0_18 = arith.constant 0 : index
    %36 = vector.load %arg7[%c0_15, %c0_16, %c0_17, %c0_18] : memref<1x4x8x8xbf16, #tpu.memory_space<vmem>>, vector<1x4x8x8xbf16>
    %37 = vector.shape_cast %36 : vector<1x4x8x8xbf16> to vector<4x8x8xbf16>
    %38 = vector.shape_cast %35 : vector<4x8x8xbf16> to vector<1x4x8x8xbf16>
    tpu.vector_store %arg7[%c0_15, %c0_16, %c0_17, %c0_18], %38 {strides = array<i32>} : memref<1x4x8x8xbf16, #tpu.memory_space<vmem>>, vector<1x4x8x8xbf16>,
    %39 = vector.extract_strided_slice %31 {offsets = [0, 32], sizes = [8, 32], strides = [1, 1]} : vector<8x96xf32> to vector<8x32xf32>
    %40 = arith.truncf %39 : vector<8x32xf32> to vector<8x32xbf16>
    %41 = vector.shape_cast %40 : vector<8x32xbf16> to vector<8x4x8xbf16>
    %42 = tpu.transpose %41, [1, 0, 2] : vector<8x4x8xbf16> -> vector<4x8x8xbf16>
    %c0_19 = arith.constant 0 : index
    %c0_20 = arith.constant 0 : index
    %c0_21 = arith.constant 0 : index
    %c0_22 = arith.constant 0 : index
    %43 = vector.load %arg8[%c0_19, %c0_20, %c0_21, %c0_22] : memref<1x4x8x8xbf16, #tpu.memory_space<vmem>>, vector<1x4x8x8xbf16>
    %44 = vector.shape_cast %43 : vector<1x4x8x8xbf16> to vector<4x8x8xbf16>
    %45 = vector.shape_cast %42 : vector<4x8x8xbf16> to vector<1x4x8x8xbf16>
    tpu.vector_store %arg8[%c0_19, %c0_20, %c0_21, %c0_22], %45 {strides = array<i32>} : memref<1x4x8x8xbf16, #tpu.memory_space<vmem>>, vector<1x4x8x8xbf16>,
    %46 = vector.extract_strided_slice %31 {offsets = [0, 64], sizes = [8, 32], strides = [1, 1]} : vector<8x96xf32> to vector<8x32xf32>
    %47 = arith.truncf %46 : vector<8x32xf32> to vector<8x32xbf16>
    %48 = vector.shape_cast %47 : vector<8x32xbf16> to vector<8x4x8xbf16>
    %49 = tpu.transpose %48, [1, 0, 2] : vector<8x4x8xbf16> -> vector<4x8x8xbf16>
    %c0_23 = arith.constant 0 : index
    %c0_24 = arith.constant 0 : index
    %c0_25 = arith.constant 0 : index
    %c0_26 = arith.constant 0 : index
    %50 = vector.load %arg9[%c0_23, %c0_24, %c0_25, %c0_26] : memref<1x4x8x8xbf16, #tpu.memory_space<vmem>>, vector<1x4x8x8xbf16>
    %51 = vector.shape_cast %50 : vector<1x4x8x8xbf16> to vector<4x8x8xbf16>
    %52 = vector.shape_cast %49 : vector<4x8x8xbf16> to vector<1x4x8x8xbf16>
    tpu.vector_store %arg9[%c0_23, %c0_24, %c0_25, %c0_26], %52 {strides = array<i32>} : memref<1x4x8x8xbf16, #tpu.memory_space<vmem>>, vector<1x4x8x8xbf16>,
    return
  }
  func.func @transform_0(%arg0: i32, %arg1: i32) -> (i32, i32, i32) {
    %c0_i32 = arith.constant 0 : i32
    %c0_i32_0 = arith.constant 0 : i32
    return %arg0, %arg1, %c0_i32 : i32, i32, i32
  }
  func.func @transform_1(%arg0: i32, %arg1: i32) -> (i32, i32) {
    %c0_i32 = arith.constant 0 : i32
    %c0_i32_0 = arith.constant 0 : i32
    %c0_i32_1 = arith.constant 0 : i32
    return %c0_i32, %c0_i32_0 : i32, i32
  }
  func.func @transform_2(%arg0: i32, %arg1: i32) -> (i32, i32) {
    %c0_i32 = arith.constant 0 : i32
    %c0_i32_0 = arith.constant 0 : i32
    %c0_i32_1 = arith.constant 0 : i32
    return %c0_i32, %c0_i32_0 : i32, i32
  }
  func.func @transform_3(%arg0: i32, %arg1: i32) -> (i32, i32) {
    %c0_i32 = arith.constant 0 : i32
    %c0_i32_0 = arith.constant 0 : i32
    %c0_i32_1 = arith.constant 0 : i32
    return %c0_i32, %c0_i32_0 : i32, i32
  }
  func.func @transform_4(%arg0: i32, %arg1: i32) -> (i32, i32) {
    %c0_i32 = arith.constant 0 : i32
    %c0_i32_0 = arith.constant 0 : i32
    %c0_i32_1 = arith.constant 0 : i32
    return %c0_i32, %c0_i32_0 : i32, i32
  }
  func.func @transform_5(%arg0: i32, %arg1: i32) -> (i32, i32, i32, i32) {
    %c0_i32 = arith.constant 0 : i32
    %c0_i32_0 = arith.constant 0 : i32
    %c0_i32_1 = arith.constant 0 : i32
    return %arg0, %c0_i32, %arg1, %c0_i32_0 : i32, i32, i32, i32
  }
  func.func @transform_6(%arg0: i32, %arg1: i32) -> (i32, i32, i32, i32) {
    %c0_i32 = arith.constant 0 : i32
    %c0_i32_0 = arith.constant 0 : i32
    %c0_i32_1 = arith.constant 0 : i32
    return %arg0, %c0_i32, %arg1, %c0_i32_0 : i32, i32, i32, i32
  }
  func.func @transform_7(%arg0: i32, %arg1: i32) -> (i32, i32, i32, i32) {
    %c0_i32 = arith.constant 0 : i32
    %c0_i32_0 = arith.constant 0 : i32
    %c0_i32_1 = arith.constant 0 : i32
    return %arg0, %c0_i32, %arg1, %c0_i32_0 : i32, i32, i32, i32
  }
}

</mosaic_0001>

<llo_original>
// kernel: tpu_custom_call.1
$region0: #{tpu_custom_call.1}
  #allocation0 [shape = 'u32[]', space=smem, size = 0x4, offset = 0x4, fixed_abs, tag = 'smem constant byte address 0x4 - core index']
  #allocation1 [shape = 'u32[144,128]{1,0:T(1,128)}', space=vmem, size = 0x12000, scoped, tag = 'internal scratch']
  %s0 = inlined_call_operand.hbm [shape: f32[2,8,32], index: 0, kind: input, shape index: {}]
  %s1 = inlined_call_operand.hbm [shape: f32[1,32], index: 1, kind: input, shape index: {}]
  %s2 = inlined_call_operand.hbm [shape: f32[1,32], index: 2, kind: input, shape index: {}]
  %s3 = inlined_call_operand.hbm [shape: bf16[32,96], index: 3, kind: input, shape index: {}]
  %s4 = inlined_call_operand.hbm [shape: f32[1,96], index: 4, kind: input, shape index: {}]
  %s5 = inlined_call_operand.hbm [shape: bf16[2,4,8,8], index: 5, kind: output, shape index: {0}]
  %s6 = inlined_call_operand.hbm [shape: bf16[2,4,8,8], index: 6, kind: output, shape index: {1}]
  %s7 = inlined_call_operand.hbm [shape: bf16[2,4,8,8], index: 7, kind: output, shape index: {2}]
  %8 = xla_tuple %s5, %s6, %s7
  %s9 = sld [smem:[#allocation0]]
  $region89: #{tpu_custom_call.1} parent=0
    _
  %s11 = ssub.s32 1, %s9
  %s12 = scalar_select 0, %s11, %s9
  $region1: #{tpu_custom_call.1} parent=0
    #allocation2 [shape = 'u8[8192]{0}', space=vmem, size = 0x2000, scoped, tag = 'input window, operand 0']
    #allocation3 [shape = 's32[2]{0}', space=sflag, size = 0x8, scoped, tag = 'scoped memory for tpu_custom_call.1']
    #allocation4 [shape = 's32[2]{0}', space=sflag, size = 0x8, scoped, tag = 'scoped memory for tpu_custom_call.1']
    #allocation5 [shape = 'u8[512]{0}', space=vmem, size = 0x400, scoped, tag = 'input window, operand 1, single buffered']
    #allocation6 [shape = 's32[1]{0}', space=sflag, size = 0x4, scoped, tag = 'scoped memory for tpu_custom_call.1']
    #allocation7 [shape = 'u8[512]{0}', space=vmem, size = 0x400, scoped, tag = 'input window, operand 2, single buffered']
    #allocation8 [shape = 'u8[8192]{0}', space=vmem, size = 0x2000, scoped, tag = 'input window, operand 3, single buffered']
    #allocation9 [shape = 's32[1]{0}', space=sflag, size = 0x4, scoped, tag = 'scoped memory for tpu_custom_call.1']
    #allocation10 [shape = 'u8[512]{0}', space=vmem, size = 0x400, scoped, tag = 'input window, operand 4, single buffered']
    #allocation11 [shape = 'u8[16384]{0}', space=vmem, size = 0x4000, scoped, tag = 'output window, operand 0']
    #allocation12 [shape = 'u8[16384]{0}', space=vmem, size = 0x4000, scoped, tag = 'output window, operand 1']
    #allocation13 [shape = 's32[2]{0}', space=sflag, size = 0x8, scoped, tag = 'scoped memory for tpu_custom_call.1']
    #allocation14 [shape = 'u8[16384]{0}', space=vmem, size = 0x4000, scoped, tag = 'output window, operand 2']
    %13 = vsyncpa [#allocation3], 0
    %s14 = scalar_lea.sflag [#allocation3], 1
    %15 = vsyncpa %s14, 0
    %16 = vsyncpa [#allocation6], 0
    %17 = vsyncpa [#allocation9], 0
    %18 = vsyncpa [#allocation4], 0
    %s19 = scalar_lea.sflag [#allocation4], 1
    %20 = vsyncpa %s19, 0
    %21 = vsyncpa [#allocation13], 0
    %s22 = scalar_lea.sflag [#allocation13], 1
    %23 = vsyncpa %s22, 0
    loop: start=0, step=1, limit=4
    $region2: #{tpu_custom_call.1} parent=1 // loop_pre_header
      _
    $region3: #{tpu_custom_call.1} parent=1 // loop_header
      %s25 = sphi 0, %s29
      %p26 = scmp.ge.s32.totalorder %s25, 4
      %s32 = sphi 0, %s44
      %s33 = sphi 0, %s40
      %s34 = sphi 0, %s32
      %s35 = sphi 0, %s33
      %s36 = sphi 0, %s34
      %s37 = sphi 0, %s35
      %s49 = sphi 0, %s51
      %s52 = sphi 0, %s49
      %s53 = sphi 0, %s52
      %s69 = sphi 0, %s53
      %s73 = sphi 0, %s73
      %s75 = sphi 0, %s73
      %s76 = sphi 0, %s75
      %s90 = sphi 0, %s76
      %s94 = sphi 0, %s94
      %s96 = sphi 0, %s94
      %s97 = sphi 0, %s96
      %s111 = sphi 0, %s97
      %s115 = sphi 0, %s115
      %s117 = sphi 0, %s115
      %s118 = sphi 0, %s117
      %s132 = sphi 0, %s118
      %s136 = sphi 0, %s136
      %s138 = sphi 0, %s136
      %s139 = sphi 0, %s138
      %s153 = sphi 0, %s139
      %s161 = sphi 0, %s163
      %s164 = sphi 0, %s161
      %s165 = sphi 0, %s164
      %s181 = sphi 0, %s165
      %s189 = sphi 0, %s191
      %s192 = sphi 0, %s189
      %s193 = sphi 0, %s192
      %s209 = sphi 0, %s193
      %s217 = sphi 0, %s219
      %s220 = sphi 0, %s217
      %s221 = sphi 0, %s220
      %s237 = sphi 0, %s221
    $region4: #{tpu_custom_call.1} parent=1 // loop_header_branch
      %28 = sbr.rel (%p26) target = $region8
    $region5: #{tpu_custom_call.1} parent=1 // loop_body
      %s30 = ssub.s32 %s25, 1
      %s31 = ssub.s32 %s25, 2
      %s38 = sadd.s32 1, %s33
      %p39 = scmp.ge.s32.totalorder %s38, 1
      %s40 = scalar_select %p39, 0, %s38
      %s41 = sadd.s32 1, %s32
      %s42 = scalar_select %p39, %s41, %s32
      %p43 = scmp.ge.s32.totalorder %s42, 2
      %s44 = scalar_select %p43, 0, %s42
      %s45 = ssub.s32 %s32, %s44
      %s46 = ssub.s32 %s33, %s40
      %s47 = sor.u32 %s45, %s46
      %p48 = scmp.eq.s32.totalorder %s47, 0
      %s50 = sadd.s32 %s49, 1
      %s51 = scalar_select %p48, %s49, %s50
      %p54 = pneg %p48
      %p55 = scmp.eq.s32.totalorder %s25, 1
      %p56 = por %p54, %p55
      %p57 = scmp.ne.s32.totalorder %s49, %s52
      %p58 = scmp.eq.s32.totalorder %s25, 0
      %p59 = por %p57, %p58
      %p60 = scmp.ne.s32.totalorder %s49, %s52
      %p61 = scmp.eq.s32.totalorder %s30, 1
      %p62 = por %p60, %p61
      %p63 = scmp.ne.s32.totalorder %s52, %s53
      %p64 = scmp.eq.s32.totalorder %s30, 0
      %p65 = por %p63, %p64
      %p66 = scmp.ne.s32.totalorder %s52, %s53
      %p67 = scmp.eq.s32.totalorder %s31, 1
      %p68 = por %p66, %p67
      %p70 = scmp.ne.s32.totalorder %s53, %s69
      %p71 = scmp.eq.s32.totalorder %s31, 0
      %p72 = por %p70, %p71
      %s74 = sadd.s32 %s73, 1
      %p77 = scmp.eq.s32.totalorder %s25, 1
      %p78 = scmp.ne.s32.totalorder %s73, %s75
      %p79 = scmp.eq.s32.totalorder %s25, 0
      %p80 = por %p78, %p79
      %p81 = scmp.ne.s32.totalorder %s73, %s75
      %p82 = scmp.eq.s32.totalorder %s30, 1
      %p83 = por %p81, %p82
      %p84 = scmp.ne.s32.totalorder %s75, %s76
      %p85 = scmp.eq.s32.totalorder %s30, 0
      %p86 = por %p84, %p85
      %p87 = scmp.ne.s32.totalorder %s75, %s76
      %p88 = scmp.eq.s32.totalorder %s31, 1
      %p89 = por %p87, %p88
      %p91 = scmp.ne.s32.totalorder %s76, %s90
      %p92 = scmp.eq.s32.totalorder %s31, 0
      %p93 = por %p91, %p92
      %s95 = sadd.s32 %s94, 1
      %p98 = scmp.eq.s32.totalorder %s25, 1
      %p99 = scmp.ne.s32.totalorder %s94, %s96
      %p100 = scmp.eq.s32.totalorder %s25, 0
      %p101 = por %p99, %p100
      %p102 = scmp.ne.s32.totalorder %s94, %s96
      %p103 = scmp.eq.s32.totalorder %s30, 1
      %p104 = por %p102, %p103
      %p105 = scmp.ne.s32.totalorder %s96, %s97
      %p106 = scmp.eq.s32.totalorder %s30, 0
      %p107 = por %p105, %p106
      %p108 = scmp.ne.s32.totalorder %s96, %s97
      %p109 = scmp.eq.s32.totalorder %s31, 1
      %p110 = por %p108, %p109
      %p112 = scmp.ne.s32.totalorder %s97, %s111
      %p113 = scmp.eq.s32.totalorder %s31, 0
      %p114 = por %p112, %p113
      %s116 = sadd.s32 %s115, 1
      %p119 = scmp.eq.s32.totalorder %s25, 1
      %p120 = scmp.ne.s32.totalorder %s115, %s117
      %p121 = scmp.eq.s32.totalorder %s25, 0
      %p122 = por %p120, %p121
      %p123 = scmp.ne.s32.totalorder %s115, %s117
      %p124 = scmp.eq.s32.totalorder %s30, 1
      %p125 = por %p123, %p124
      %p126 = scmp.ne.s32.totalorder %s117, %s118
      %p127 = scmp.eq.s32.totalorder %s30, 0
      %p128 = por %p126, %p127
      %p129 = scmp.ne.s32.totalorder %s117, %s118
      %p130 = scmp.eq.s32.totalorder %s31, 1
      %p131 = por %p129, %p130
      %p133 = scmp.ne.s32.totalorder %s118, %s132
      %p134 = scmp.eq.s32.totalorder %s31, 0
      %p135 = por %p133, %p134
      %s137 = sadd.s32 %s136, 1
      %p140 = scmp.eq.s32.totalorder %s25, 1
      %p141 = scmp.ne.s32.totalorder %s136, %s138
      %p142 = scmp.eq.s32.totalorder %s25, 0
      %p143 = por %p141, %p142
      %p144 = scmp.ne.s32.totalorder %s136, %s138
      %p145 = scmp.eq.s32.totalorder %s30, 1
      %p146 = por %p144, %p145
      %p147 = scmp.ne.s32.totalorder %s138, %s139
      %p148 = scmp.eq.s32.totalorder %s30, 0
      %p149 = por %p147, %p148
      %p150 = scmp.ne.s32.totalorder %s138, %s139
      %p151 = scmp.eq.s32.totalorder %s31, 1
      %p152 = por %p150, %p151
      %p154 = scmp.ne.s32.totalorder %s139, %s153
      %p155 = scmp.eq.s32.totalorder %s31, 0
      %p156 = por %p154, %p155
      %s157 = ssub.s32 %s32, %s44
      %s158 = ssub.s32 %s33, %s40
      %s159 = sor.u32 %s157, %s158
      %p160 = scmp.eq.s32.totalorder %s159, 0
      %s162 = sadd.s32 %s161, 1
      %s163 = scalar_select %p160, %s161, %s162
      %p166 = pneg %p160
      %p167 = scmp.eq.s32.totalorder %s25, 1
      %p168 = por %p166, %p167
      %p169 = scmp.ne.s32.totalorder %s161, %s164
      %p170 = scmp.eq.s32.totalorder %s25, 0
      %p171 = por %p169, %p170
      %p172 = scmp.ne.s32.totalorder %s161, %s164
      %p173 = scmp.eq.s32.totalorder %s30, 1
      %p174 = por %p172, %p173
      %p175 = scmp.ne.s32.totalorder %s164, %s165
      %p176 = scmp.eq.s32.totalorder %s30, 0
      %p177 = por %p175, %p176
      %p178 = scmp.ne.s32.totalorder %s164, %s165
      %p179 = scmp.eq.s32.totalorder %s31, 1
      %p180 = por %p178, %p179
      %p182 = scmp.ne.s32.totalorder %s165, %s181
      %p183 = scmp.eq.s32.totalorder %s31, 0
      %p184 = por %p182, %p183
      %s185 = ssub.s32 %s32, %s44
      %s186 = ssub.s32 %s33, %s40
      %s187 = sor.u32 %s185, %s186
      %p188 = scmp.eq.s32.totalorder %s187, 0
      %s190 = sadd.s32 %s189, 1
      %s191 = scalar_select %p188, %s189, %s190
      %p194 = pneg %p188
      %p195 = scmp.eq.s32.totalorder %s25, 1
      %p196 = por %p194, %p195
      %p197 = scmp.ne.s32.totalorder %s189, %s192
      %p198 = scmp.eq.s32.totalorder %s25, 0
      %p199 = por %p197, %p198
      %p200 = scmp.ne.s32.totalorder %s189, %s192
      %p201 = scmp.eq.s32.totalorder %s30, 1
      %p202 = por %p200, %p201
      %p203 = scmp.ne.s32.totalorder %s192, %s193
      %p204 = scmp.eq.s32.totalorder %s30, 0
      %p205 = por %p203, %p204
      %p206 = scmp.ne.s32.totalorder %s192, %s193
      %p207 = scmp.eq.s32.totalorder %s31, 1
      %p208 = por %p206, %p207
      %p210 = scmp.ne.s32.totalorder %s193, %s209
      %p211 = scmp.eq.s32.totalorder %s31, 0
      %p212 = por %p210, %p211
      %s213 = ssub.s32 %s32, %s44
      %s214 = ssub.s32 %s33, %s40
      %s215 = sor.u32 %s213, %s214
      %p216 = scmp.eq.s32.totalorder %s215, 0
      %s218 = sadd.s32 %s217, 1
      %s219 = scalar_select %p216, %s217, %s218
      %p222 = pneg %p216
      %p223 = scmp.eq.s32.totalorder %s25, 1
      %p224 = por %p222, %p223
      %p225 = scmp.ne.s32.totalorder %s217, %s220
      %p226 = scmp.eq.s32.totalorder %s25, 0
      %p227 = por %p225, %p226
      %p228 = scmp.ne.s32.totalorder %s217, %s220
      %p229 = scmp.eq.s32.totalorder %s30, 1
      %p230 = por %p228, %p229
      %p231 = scmp.ne.s32.totalorder %s220, %s221
      %p232 = scmp.eq.s32.totalorder %s30, 0
      %p233 = por %p231, %p232
      %p234 = scmp.ne.s32.totalorder %s220, %s221
      %p235 = scmp.eq.s32.totalorder %s31, 1
      %p236 = por %p234, %p235
      %p238 = scmp.ne.s32.totalorder %s221, %s237
      %p239 = scmp.eq.s32.totalorder %s31, 0
      %p240 = por %p238, %p239
      %p241 = scmp.le.s32.totalorder 1, %s25
      %p242 = scmp.lt.s32.totalorder %s25, 3
      %p243 = pnand %p241, %p242
      %p244 = pneg %p243
      // Predicated region
      $region9: #{tpu_custom_call.1} parent=5 // pred_check
        _
      $region10: #{tpu_custom_call.1} parent=5 // pred_check_branch
        %246 = sbr.rel (%p243) target = $region12
      $region11: #{tpu_custom_call.1} parent=5 // pred_region
        %s247 = ssub.s32 %s25, 1
        // Predicated region
        $region13: #{tpu_custom_call.1} parent=11 // pred_check
          %p248 = pneg %p86
        $region14: #{tpu_custom_call.1} parent=11 // pred_check_branch
          %250 = sbr.rel (%p248) target = $region16
        $region15: #{tpu_custom_call.1} parent=11 // pred_region
          %s252 = ssub.s32 16, 16
          %253 = vsyncadd [#allocation6], %s252
          %s255 = sshll.u32 [#allocation5], 4
          %s256 = int_to_ptr.vmem [resolvable:$true] %s255
          %258 = dma.hbm_to_vmem [thread:$0]  %s1, 16, %s256, [#allocation6]
        $region16: #{tpu_custom_call.1} parent=11 // pred_fallthru
          _
        // Predicated region
        $region17: #{tpu_custom_call.1} parent=11 // pred_check
          %p259 = pneg %p107
        $region18: #{tpu_custom_call.1} parent=11 // pred_check_branch
          %261 = sbr.rel (%p259) target = $region20
        $region19: #{tpu_custom_call.1} parent=11 // pred_region
          %s263 = ssub.s32 16, 16
          %264 = vsyncadd [#allocation6], %s263
          %s266 = sshll.u32 [#allocation7], 4
          %s267 = int_to_ptr.vmem [resolvable:$true] %s266
          %269 = dma.hbm_to_vmem [thread:$0]  %s2, 16, %s267, [#allocation6]
        $region20: #{tpu_custom_call.1} parent=11 // pred_fallthru
          _
        // Predicated region
        $region21: #{tpu_custom_call.1} parent=11 // pred_check
          %p270 = pneg %p128
        $region22: #{tpu_custom_call.1} parent=11 // pred_check_branch
          %272 = sbr.rel (%p270) target = $region24
        $region23: #{tpu_custom_call.1} parent=11 // pred_region
          %s274 = ssub.s32 256, 256
          %275 = vsyncadd [#allocation9], %s274
          %s276 = sshll.u32 [#allocation8], 4
          %s277 = int_to_ptr.vmem [resolvable:$true] %s276
          %282 = dma.hbm_to_vmem [thread:$0]  %s3, 256, %s277, [#allocation9], 64, 64, 4
        $region24: #{tpu_custom_call.1} parent=11 // pred_fallthru
          _
        // Predicated region
        $region25: #{tpu_custom_call.1} parent=11 // pred_check
          %p283 = pneg %p149
        $region26: #{tpu_custom_call.1} parent=11 // pred_check_branch
          %285 = sbr.rel (%p283) target = $region28
        $region27: #{tpu_custom_call.1} parent=11 // pred_region
          %s287 = ssub.s32 16, 16
          %288 = vsyncadd [#allocation9], %s287
          %s290 = sshll.u32 [#allocation10], 4
          %s291 = int_to_ptr.vmem [resolvable:$true] %s290
          %293 = dma.hbm_to_vmem [thread:$0]  %s4, 16, %s291, [#allocation9]
        $region28: #{tpu_custom_call.1} parent=11 // pred_fallthru
          _
      $region12: #{tpu_custom_call.1} parent=5 // pred_fallthru
        _
      %p294 = scmp.lt.s32.totalorder %s25, 2
      // Predicated region
      $region29: #{tpu_custom_call.1} parent=5 // pred_check
        %p295 = pneg %p294
      $region30: #{tpu_custom_call.1} parent=5 // pred_check_branch
        %297 = sbr.rel (%p295) target = $region32
      $region31: #{tpu_custom_call.1} parent=5 // pred_region
        // Predicated region
        $region33: #{tpu_custom_call.1} parent=31 // pred_check
          %p298 = pneg %p59
        $region34: #{tpu_custom_call.1} parent=31 // pred_check_branch
          %300 = sbr.rel (%p298) target = $region36
        $region35: #{tpu_custom_call.1} parent=31 // pred_region
          %s301 = sand.u32 %s49, 1
          %s302 = scalar_lea.sflag [#allocation3], %s301
          %s303 = sand.u32 %s49, 1
          %s304 = smul.addr %s303, 8
          %s305 = scalar_lea.vmem [#allocation2], %s304
          %s307 = ssub.s32 128, 128
          %308 = vsyncadd %s302, %s307
          %s309 = sadd.s32 %s33, %s32
          %s310 = smul.addr %s309, 128
          %s311 = scalar_lea.hbm %s0, %s310
          %s313 = sshll.u32 %s305, 4
          %s314 = int_to_ptr.vmem [resolvable:$true] %s313
          %316 = dma.hbm_to_vmem [thread:$0]  %s311, 128, %s314, %s302
        $region36: #{tpu_custom_call.1} parent=31 // pred_fallthru
          _
      $region32: #{tpu_custom_call.1} parent=5 // pred_fallthru
        _
      %p317 = scmp.le.s32.totalorder 1, %s25
      %p318 = scmp.lt.s32.totalorder %s25, 3
      %p319 = pnand %p317, %p318
      %p320 = pneg %p319
      // Predicated region
      $region37: #{tpu_custom_call.1} parent=5 // pred_check
        _
      $region38: #{tpu_custom_call.1} parent=5 // pred_check_branch
        %322 = sbr.rel (%p319) target = $region40
      $region39: #{tpu_custom_call.1} parent=5 // pred_region
        %s323 = ssub.s32 %s25, 1
        %s324 = sand.u32 %s52, 1
        %s325 = scalar_lea.sflag [#allocation3], %s324
        %s326 = sand.u32 %s52, 1
        %s327 = smul.addr %s326, 8
        %s328 = scalar_lea.vmem [#allocation2], %s327
        // Predicated region
        $region41: #{tpu_custom_call.1} parent=39 // pred_check
          %p329 = pneg %p65
        $region42: #{tpu_custom_call.1} parent=39 // pred_check_branch
          %331 = sbr.rel (%p329) target = $region44
        $region43: #{tpu_custom_call.1} parent=39 // pred_region
          %332 = dma.done %s325, 128
        $region44: #{tpu_custom_call.1} parent=39 // pred_fallthru
          _
        // Predicated region
        $region45: #{tpu_custom_call.1} parent=39 // pred_check
          %p333 = pneg %p86
        $region46: #{tpu_custom_call.1} parent=39 // pred_check_branch
          %335 = sbr.rel (%p333) target = $region48
        $region47: #{tpu_custom_call.1} parent=39 // pred_region
          %336 = dma.done [#allocation6], 16
        $region48: #{tpu_custom_call.1} parent=39 // pred_fallthru
          _
        // Predicated region
        $region49: #{tpu_custom_call.1} parent=39 // pred_check
          %p337 = pneg %p107
        $region50: #{tpu_custom_call.1} parent=39 // pred_check_branch
          %339 = sbr.rel (%p337) target = $region52
        $region51: #{tpu_custom_call.1} parent=39 // pred_region
          %340 = dma.done [#allocation6], 16
        $region52: #{tpu_custom_call.1} parent=39 // pred_fallthru
          _
        // Predicated region
        $region53: #{tpu_custom_call.1} parent=39 // pred_check
          %p341 = pneg %p128
        $region54: #{tpu_custom_call.1} parent=39 // pred_check_branch
          %343 = sbr.rel (%p341) target = $region56
        $region55: #{tpu_custom_call.1} parent=39 // pred_region
          %344 = dma.done [#allocation9], 256
        $region56: #{tpu_custom_call.1} parent=39 // pred_fallthru
          _
        // Predicated region
        $region57: #{tpu_custom_call.1} parent=39 // pred_check
          %p345 = pneg %p149
        $region58: #{tpu_custom_call.1} parent=39 // pred_check_branch
          %347 = sbr.rel (%p345) target = $region60
        $region59: #{tpu_custom_call.1} parent=39 // pred_region
          %348 = dma.done [#allocation9], 16
        $region60: #{tpu_custom_call.1} parent=39 // pred_fallthru
          _
        %s349 = sand.u32 %s52, 1
        %s350 = scalar_lea.sflag [#allocation3], %s349
        %s351 = sand.u32 %s52, 1
        %s352 = smul.addr %s351, 8
        %s353 = scalar_lea.vmem [#allocation2], %s352
        %p354 = pneg %p65
        %p355 = pneg %p62
        %p356 = pneg %p86
        %p357 = pneg %p83
        %p358 = pneg %p107
        %p359 = pneg %p104
        %p360 = pneg %p128
        %p361 = pneg %p125
        %p362 = pneg %p149
        %p363 = pneg %p146
        %p364 = pneg %p177
        %p365 = pneg %p174
        %s366 = sand.u32 %s164, 1
        %s367 = scalar_lea.sflag [#allocation4], %s366
        %s368 = sand.u32 %s164, 1
        %s369 = smul.addr %s368, 16
        %s370 = scalar_lea.vmem [#allocation11], %s369
        %p371 = pneg %p205
        %p372 = pneg %p202
        %s373 = sand.u32 %s30, 1
        %s374 = scalar_lea.sflag [#allocation13], %s373
        %s375 = sand.u32 %s192, 1
        %s376 = smul.addr %s375, 16
        %s377 = scalar_lea.vmem [#allocation12], %s376
        %p378 = pneg %p233
        %p379 = pneg %p230
        %s380 = sand.u32 %s30, 1
        %s381 = scalar_lea.sflag [#allocation13], %s380
        %s382 = sand.u32 %s220, 1
        %s383 = smul.addr %s382, 16
        %s384 = scalar_lea.vmem [#allocation14], %s383
        %v386 = vld [vmem:[%s328] sm:$0xff]
        %v387 = vld [vmem:[#allocation5] sm:$0x1]
        %v388 = vld [vmem:[#allocation7] sm:$0x1]
        %vm389 = vcmask 261120
        %v390 = vsel %vm389, %v386, 0.0
        %391 = vadd.xlane.f32.xlu0 %v390
        %v392 = vpop.xlane.xlu0 %391
        %v393 = vrcp.pop 32.0
        %v394 = vmul.f32 %v392, %v393
        %v395 = vsub.f32 %v386, %v394
        %v396 = vmul.f32 %v395, %v395
        %v397 = vsel %vm389, %v396, 0.0
        %398 = vadd.xlane.f32.xlu0 %v397
        %v399 = vpop.xlane.xlu0 %398
        %v400 = vmul.f32 %v399, %v393
        %v401 = vadd.f32 %v400, 1e-05
        %v402 = vrsqrt.pop %v401
        %v403 = vmul.f32 %v395, %v402
        %v405 = vlaneseq
        %v406 = vshrl.u32 %v405, 7
        %v407 = vsub.s32 0, %v406
        %v408 = vrot.slane %v387, %v407
        %v410 = vmul.f32 %v403, %v408
        %v412 = vlaneseq
        %v413 = vshrl.u32 %v412, 7
        %v414 = vsub.s32 0, %v413
        %v415 = vrot.slane %v388, %v414
        %v417 = vadd.f32 %v410, %v415
        %v418 = vpack.c.bf16 %v417, %v417
        %v419 = vld [vmem:[#allocation8] sm:$0xf]
        %v420 = vld [vmem:[#allocation8 + $0x4] sm:$0xf]
        %v421 = vld [vmem:[#allocation8 + $0x8] sm:$0xf]
        %v422 = vld [vmem:[#allocation8 + $0xc] sm:$0xf]
        %v423 = vld [vmem:[#allocation10] sm:$0x1]
        %v425 = vlaneseq
        %v426 = vshrl.u32 %v425, 7
        %v427 = vsub.s32 0, %v426
        %v428 = vrot.slane %v423, %v427
        %v434 = vunpack.c.l.b16 %v419
        %v435 = vunpack.c.l.b16 %v420
        %v436 = vunpack.c.l.b16 %v421
        %v437 = vunpack.c.l.b16 %v422
        %v438 = vpack.c.b16 %v435, %v434
        %v439 = vpack.c.b16 %v437, %v436
        %v443 = vsel %vm389, %v418, 0
        %445 = vmatprep.subr.bf16.mxu0 0
        %446 = vmatpush1.bf16.msra.mxu0 %v438
        %447 = vmatprep.subr.bf16.mxu0 0
        %448 = vmatpush1.bf16.msra.mxu0 %v439
        %449 = vmatprep.subr.bf16.mxu0 0
        %450 = vmatpush1.bf16.msra.mxu0 0
        %451 = vmatprep.subr.bf16.mxu0 0
        %452 = vmatpush1.bf16.msra.mxu0 0
        %453 = vmatprep.subr.bf16.mxu0 0
        %454 = vmatpush1.bf16.msra.mxu0 0
        %455 = vmatprep.subr.bf16.mxu0 0
        %456 = vmatpush1.bf16.msra.mxu0 0
        %457 = vmatprep.subr.bf16.mxu0 0
        %458 = vmatpush1.bf16.msra.mxu0 0
        %459 = vmatprep.subr.bf16.mxu0 0
        %460 = vmatpush1.bf16.msra.mxu0 0
        %461 = vmatprep.subr.bf16.mxu0 0
        %462 = vmatpush1.bf16.msra.mxu0 0
        %463 = vmatprep.subr.bf16.mxu0 0
        %464 = vmatpush1.bf16.msra.mxu0 0
        %465 = vmatprep.subr.bf16.mxu0 0
        %466 = vmatpush1.bf16.msra.mxu0 0
        %467 = vmatprep.subr.bf16.mxu0 0
        %468 = vmatpush1.bf16.msra.mxu0 0
        %469 = vmatprep.subr.bf16.mxu0 0
        %470 = vmatpush1.bf16.msra.mxu0 0
        %471 = vmatprep.subr.bf16.mxu0 0
        %472 = vmatpush1.bf16.msra.mxu0 0
        %473 = vmatprep.subr.bf16.mxu0 0
        %474 = vmatpush1.bf16.msra.mxu0 0
        %475 = vmatprep.subr.bf16.mxu0 0
        %476 = vmatpush1.bf16.msra.mxu0 0
        %477 = vmatprep.mubr.bf16.mxu0 0
        %478 = vmatmul.mubr.bf16.gmra.mrb[0].mxu0 %v443
        %v479 = vpop.f32.mrb[0].mxu0
        %v480 = vadd.f32 %v428, %v479
        %v481 = vpop.f32.mrb[0].mxu0
        %v482 = vpop.f32.mrb[0].mxu0
        %v483 = vpop.f32.mrb[0].mxu0
        %484 = vdwg.mxu0
        %v485 = vpack.c.bf16 %v480, %v480
        %487 = vrot.lane.b32.xlu0 %v485, 120
        %v488 = vpop.permute.xlu0 %487
        %489 = vrot.lane.b32.xlu0 %v485, 112
        %v490 = vpop.permute.xlu0 %489
        %491 = vrot.lane.b32.xlu0 %v485, 104
        %v492 = vpop.permute.xlu0 %491
        %v494 = vunpack.c.l.s4 1983009808
        %v495 = vunpack.c.0.s8 %v494
        %v496 = vlaneseq
        %v497 = vshrl.u32 %v496, 7
        %v498 = vsub.s32 %v495, %v497
        %v499 = vrot.slane %v485, %v498
        %v502 = vunpack.c.l.s4 1983009808
        %v503 = vunpack.c.0.s8 %v502
        %v504 = vlaneseq
        %v505 = vshrl.u32 %v504, 7
        %v506 = vsub.s32 %v503, %v505
        %v507 = vrot.slane %v490, %v506
        %v508 = vcombine.low %v499, %v507
        %v509 = vcombine.high %v499, %v507
        %v511 = vunpack.c.l.s4 1934713408
        %v512 = vunpack.c.0.s8 %v511
        %v513 = vlaneseq
        %v514 = vshrl.u32 %v513, 7
        %v515 = vsub.s32 %v512, %v514
        %v516 = vrot.slane %v508, %v515
        %v518 = vunpack.c.l.s4 1934713408
        %v519 = vunpack.c.0.s8 %v518
        %v520 = vlaneseq
        %v521 = vshrl.u32 %v520, 7
        %v522 = vsub.s32 %v519, %v521
        %v523 = vrot.slane %v509, %v522
        %v524 = vcombine.high %v516, 0
        %v525 = vcombine.high %v523, 0
        %v528 = vunpack.c.l.s4 1983009808
        %v529 = vunpack.c.0.s8 %v528
        %v530 = vlaneseq
        %v531 = vshrl.u32 %v530, 7
        %v532 = vsub.s32 %v529, %v531
        %v533 = vrot.slane %v488, %v532
        %v536 = vunpack.c.l.s4 1983009808
        %v537 = vunpack.c.0.s8 %v536
        %v538 = vlaneseq
        %v539 = vshrl.u32 %v538, 7
        %v540 = vsub.s32 %v537, %v539
        %v541 = vrot.slane %v492, %v540
        %v542 = vcombine.low %v533, %v541
        %v543 = vcombine.high %v533, %v541
        %v545 = vunpack.c.l.s4 1934713408
        %v546 = vunpack.c.0.s8 %v545
        %v547 = vlaneseq
        %v548 = vshrl.u32 %v547, 7
        %v549 = vsub.s32 %v546, %v548
        %v550 = vrot.slane %v542, %v549
        %v552 = vunpack.c.l.s4 1934713408
        %v553 = vunpack.c.0.s8 %v552
        %v554 = vlaneseq
        %v555 = vshrl.u32 %v554, 7
        %v556 = vsub.s32 %v553, %v555
        %v557 = vrot.slane %v543, %v556
        %v558 = vcombine.high %v550, 0
        %v559 = vcombine.high %v557, 0
        %v562 = vpack.i.b16 %v550, %v516
        %v564 = vshrl.u32 %v516, 16
        %v565 = vshrl.u32 %v550, 16
        %v566 = vpack.i.b16 %v565, %v564
        %v570 = vpack.i.b16 %v558, %v524
        %v572 = vshrl.u32 %v524, 16
        %v573 = vshrl.u32 %v558, 16
        %v574 = vpack.i.b16 %v573, %v572
        %v578 = vpack.i.b16 %v557, %v523
        %v580 = vshrl.u32 %v523, 16
        %v581 = vshrl.u32 %v557, 16
        %v582 = vpack.i.b16 %v581, %v580
        %v586 = vpack.i.b16 %v559, %v525
        %v588 = vshrl.u32 %v525, 16
        %v589 = vshrl.u32 %v559, 16
        %v590 = vpack.i.b16 %v589, %v588
        %v592 = vcombine.low %v562, %v578
        %v594 = vunpack.c.l.s4 1983009808
        %v595 = vunpack.c.0.s8 %v594
        %v596 = vlaneseq
        %v597 = vshrl.u32 %v596, 7
        %v598 = vsub.s32 %v595, %v597
        %v599 = vrot.slane %v592, %v598
        %v600 = vcombine.low %v570, %v586
        %v602 = vunpack.c.l.s4 1983009808
        %v603 = vunpack.c.0.s8 %v602
        %v604 = vlaneseq
        %v605 = vshrl.u32 %v604, 7
        %v606 = vsub.s32 %v603, %v605
        %v607 = vrot.slane %v600, %v606
        %v608 = vcombine.low %v599, %v607
        %v610 = vunpack.c.l.s4 1934713408
        %v611 = vunpack.c.0.s8 %v610
        %v612 = vlaneseq
        %v613 = vshrl.u32 %v612, 7
        %v614 = vsub.s32 %v611, %v613
        %v615 = vrot.slane %v608, %v614
        %v616 = vcombine.high %v615, 0
        %v617 = vcombine.low %v566, %v582
        %v619 = vunpack.c.l.s4 1983009808
        %v620 = vunpack.c.0.s8 %v619
        %v621 = vlaneseq
        %v622 = vshrl.u32 %v621, 7
        %v623 = vsub.s32 %v620, %v622
        %v624 = vrot.slane %v617, %v623
        %v625 = vcombine.low %v574, %v590
        %v627 = vunpack.c.l.s4 1983009808
        %v628 = vunpack.c.0.s8 %v627
        %v629 = vlaneseq
        %v630 = vshrl.u32 %v629, 7
        %v631 = vsub.s32 %v628, %v630
        %v632 = vrot.slane %v625, %v631
        %v633 = vcombine.low %v624, %v632
        %v635 = vunpack.c.l.s4 1934713408
        %v636 = vunpack.c.0.s8 %v635
        %v637 = vlaneseq
        %v638 = vshrl.u32 %v637, 7
        %v639 = vsub.s32 %v636, %v638
        %v640 = vrot.slane %v633, %v639
        %v641 = vcombine.high %v640, 0
        %v644 = vpack.i.b16 %v640, %v615
        %v646 = vshrl.u32 %v615, 16
        %v647 = vshrl.u32 %v640, 16
        %v648 = vpack.i.b16 %v647, %v646
        %v652 = vpack.i.b16 %v641, %v616
        %v654 = vshrl.u32 %v616, 16
        %v655 = vshrl.u32 %v641, 16
        %v656 = vpack.i.b16 %v655, %v654
        %vm658 = vcmask 60416
        %659 = vst.msk [vmem:[%s370] sm:$0xf] %vm658, %v644
        %660 = vst.msk [vmem:[%s370 + $0x4] sm:$0xf] %vm658, %v648
        %661 = vst.msk [vmem:[%s370 + $0x8] sm:$0xf] %vm658, %v652
        %662 = vst.msk [vmem:[%s370 + $0xc] sm:$0xf] %vm658, %v656
        %663 = vrot.lane.b32.xlu0 %v485, 96
        %v664 = vpop.permute.xlu0 %663
        %665 = vrot.lane.b32.xlu0 %v488, 96
        %v666 = vpop.permute.xlu0 %665
        %667 = vrot.lane.b32.xlu0 %v490, 96
        %v668 = vpop.permute.xlu0 %667
        %669 = vrot.lane.b32.xlu0 %v492, 96
        %v670 = vpop.permute.xlu0 %669
        %v673 = vunpack.c.l.s4 1983009808
        %v674 = vunpack.c.0.s8 %v673
        %v675 = vlaneseq
        %v676 = vshrl.u32 %v675, 7
        %v677 = vsub.s32 %v674, %v676
        %v678 = vrot.slane %v664, %v677
        %v681 = vunpack.c.l.s4 1983009808
        %v682 = vunpack.c.0.s8 %v681
        %v683 = vlaneseq
        %v684 = vshrl.u32 %v683, 7
        %v685 = vsub.s32 %v682, %v684
        %v686 = vrot.slane %v668, %v685
        %v687 = vcombine.low %v678, %v686
        %v688 = vcombine.high %v678, %v686
        %v690 = vunpack.c.l.s4 1934713408
        %v691 = vunpack.c.0.s8 %v690
        %v692 = vlaneseq
        %v693 = vshrl.u32 %v692, 7
        %v694 = vsub.s32 %v691, %v693
        %v695 = vrot.slane %v687, %v694
        %v697 = vunpack.c.l.s4 1934713408
        %v698 = vunpack.c.0.s8 %v697
        %v699 = vlaneseq
        %v700 = vshrl.u32 %v699, 7
        %v701 = vsub.s32 %v698, %v700
        %v702 = vrot.slane %v688, %v701
        %v703 = vcombine.high %v695, 0
        %v704 = vcombine.high %v702, 0
        %v707 = vunpack.c.l.s4 1983009808
        %v708 = vunpack.c.0.s8 %v707
        %v709 = vlaneseq
        %v710 = vshrl.u32 %v709, 7
        %v711 = vsub.s32 %v708, %v710
        %v712 = vrot.slane %v666, %v711
        %v715 = vunpack.c.l.s4 1983009808
        %v716 = vunpack.c.0.s8 %v715
        %v717 = vlaneseq
        %v718 = vshrl.u32 %v717, 7
        %v719 = vsub.s32 %v716, %v718
        %v720 = vrot.slane %v670, %v719
        %v721 = vcombine.low %v712, %v720
        %v722 = vcombine.high %v712, %v720
        %v724 = vunpack.c.l.s4 1934713408
        %v725 = vunpack.c.0.s8 %v724
        %v726 = vlaneseq
        %v727 = vshrl.u32 %v726, 7
        %v728 = vsub.s32 %v725, %v727
        %v729 = vrot.slane %v721, %v728
        %v731 = vunpack.c.l.s4 1934713408
        %v732 = vunpack.c.0.s8 %v731
        %v733 = vlaneseq
        %v734 = vshrl.u32 %v733, 7
        %v735 = vsub.s32 %v732, %v734
        %v736 = vrot.slane %v722, %v735
        %v737 = vcombine.high %v729, 0
        %v738 = vcombine.high %v736, 0
        %v741 = vpack.i.b16 %v729, %v695
        %v743 = vshrl.u32 %v695, 16
        %v744 = vshrl.u32 %v729, 16
        %v745 = vpack.i.b16 %v744, %v743
        %v749 = vpack.i.b16 %v737, %v703
        %v751 = vshrl.u32 %v703, 16
        %v752 = vshrl.u32 %v737, 16
        %v753 = vpack.i.b16 %v752, %v751
        %v757 = vpack.i.b16 %v736, %v702
        %v759 = vshrl.u32 %v702, 16
        %v760 = vshrl.u32 %v736, 16
        %v761 = vpack.i.b16 %v760, %v759
        %v765 = vpack.i.b16 %v738, %v704
        %v767 = vshrl.u32 %v704, 16
        %v768 = vshrl.u32 %v738, 16
        %v769 = vpack.i.b16 %v768, %v767
        %v771 = vcombine.low %v741, %v757
        %v773 = vunpack.c.l.s4 1983009808
        %v774 = vunpack.c.0.s8 %v773
        %v775 = vlaneseq
        %v776 = vshrl.u32 %v775, 7
        %v777 = vsub.s32 %v774, %v776
        %v778 = vrot.slane %v771, %v777
        %v779 = vcombine.low %v749, %v765
        %v781 = vunpack.c.l.s4 1983009808
        %v782 = vunpack.c.0.s8 %v781
        %v783 = vlaneseq
        %v784 = vshrl.u32 %v783, 7
        %v785 = vsub.s32 %v782, %v784
        %v786 = vrot.slane %v779, %v785
        %v787 = vcombine.low %v778, %v786
        %v789 = vunpack.c.l.s4 1934713408
        %v790 = vunpack.c.0.s8 %v789
        %v791 = vlaneseq
        %v792 = vshrl.u32 %v791, 7
        %v793 = vsub.s32 %v790, %v792
        %v794 = vrot.slane %v787, %v793
        %v795 = vcombine.high %v794, 0
        %v796 = vcombine.low %v745, %v761
        %v798 = vunpack.c.l.s4 1983009808
        %v799 = vunpack.c.0.s8 %v798
        %v800 = vlaneseq
        %v801 = vshrl.u32 %v800, 7
        %v802 = vsub.s32 %v799, %v801
        %v803 = vrot.slane %v796, %v802
        %v804 = vcombine.low %v753, %v769
        %v806 = vunpack.c.l.s4 1983009808
        %v807 = vunpack.c.0.s8 %v806
        %v808 = vlaneseq
        %v809 = vshrl.u32 %v808, 7
        %v810 = vsub.s32 %v807, %v809
        %v811 = vrot.slane %v804, %v810
        %v812 = vcombine.low %v803, %v811
        %v814 = vunpack.c.l.s4 1934713408
        %v815 = vunpack.c.0.s8 %v814
        %v816 = vlaneseq
        %v817 = vshrl.u32 %v816, 7
        %v818 = vsub.s32 %v815, %v817
        %v819 = vrot.slane %v812, %v818
        %v820 = vcombine.high %v819, 0
        %v823 = vpack.i.b16 %v819, %v794
        %v825 = vshrl.u32 %v794, 16
        %v826 = vshrl.u32 %v819, 16
        %v827 = vpack.i.b16 %v826, %v825
        %v831 = vpack.i.b16 %v820, %v795
        %v833 = vshrl.u32 %v795, 16
        %v834 = vshrl.u32 %v820, 16
        %v835 = vpack.i.b16 %v834, %v833
        %837 = vst.msk [vmem:[%s377] sm:$0xf] %vm658, %v823
        %838 = vst.msk [vmem:[%s377 + $0x4] sm:$0xf] %vm658, %v827
        %839 = vst.msk [vmem:[%s377 + $0x8] sm:$0xf] %vm658, %v831
        %840 = vst.msk [vmem:[%s377 + $0xc] sm:$0xf] %vm658, %v835
        %841 = vrot.lane.b32.xlu0 %v485, 64
        %v842 = vpop.permute.xlu0 %841
        %843 = vrot.lane.b32.xlu0 %v488, 64
        %v844 = vpop.permute.xlu0 %843
        %845 = vrot.lane.b32.xlu0 %v490, 64
        %v846 = vpop.permute.xlu0 %845
        %847 = vrot.lane.b32.xlu0 %v492, 64
        %v848 = vpop.permute.xlu0 %847
        %v851 = vunpack.c.l.s4 1983009808
        %v852 = vunpack.c.0.s8 %v851
        %v853 = vlaneseq
        %v854 = vshrl.u32 %v853, 7
        %v855 = vsub.s32 %v852, %v854
        %v856 = vrot.slane %v842, %v855
        %v859 = vunpack.c.l.s4 1983009808
        %v860 = vunpack.c.0.s8 %v859
        %v861 = vlaneseq
        %v862 = vshrl.u32 %v861, 7
        %v863 = vsub.s32 %v860, %v862
        %v864 = vrot.slane %v846, %v863
        %v865 = vcombine.low %v856, %v864
        %v866 = vcombine.high %v856, %v864
        %v868 = vunpack.c.l.s4 1934713408
        %v869 = vunpack.c.0.s8 %v868
        %v870 = vlaneseq
        %v871 = vshrl.u32 %v870, 7
        %v872 = vsub.s32 %v869, %v871
        %v873 = vrot.slane %v865, %v872
        %v875 = vunpack.c.l.s4 1934713408
        %v876 = vunpack.c.0.s8 %v875
        %v877 = vlaneseq
        %v878 = vshrl.u32 %v877, 7
        %v879 = vsub.s32 %v876, %v878
        %v880 = vrot.slane %v866, %v879
        %v881 = vcombine.high %v873, 0
        %v882 = vcombine.high %v880, 0
        %v885 = vunpack.c.l.s4 1983009808
        %v886 = vunpack.c.0.s8 %v885
        %v887 = vlaneseq
        %v888 = vshrl.u32 %v887, 7
        %v889 = vsub.s32 %v886, %v888
        %v890 = vrot.slane %v844, %v889
        %v893 = vunpack.c.l.s4 1983009808
        %v894 = vunpack.c.0.s8 %v893
        %v895 = vlaneseq
        %v896 = vshrl.u32 %v895, 7
        %v897 = vsub.s32 %v894, %v896
        %v898 = vrot.slane %v848, %v897
        %v899 = vcombine.low %v890, %v898
        %v900 = vcombine.high %v890, %v898
        %v902 = vunpack.c.l.s4 1934713408
        %v903 = vunpack.c.0.s8 %v902
        %v904 = vlaneseq
        %v905 = vshrl.u32 %v904, 7
        %v906 = vsub.s32 %v903, %v905
        %v907 = vrot.slane %v899, %v906
        %v909 = vunpack.c.l.s4 1934713408
        %v910 = vunpack.c.0.s8 %v909
        %v911 = vlaneseq
        %v912 = vshrl.u32 %v911, 7
        %v913 = vsub.s32 %v910, %v912
        %v914 = vrot.slane %v900, %v913
        %v915 = vcombine.high %v907, 0
        %v916 = vcombine.high %v914, 0
        %v919 = vpack.i.b16 %v907, %v873
        %v921 = vshrl.u32 %v873, 16
        %v922 = vshrl.u32 %v907, 16
        %v923 = vpack.i.b16 %v922, %v921
        %v927 = vpack.i.b16 %v915, %v881
        %v929 = vshrl.u32 %v881, 16
        %v930 = vshrl.u32 %v915, 16
        %v931 = vpack.i.b16 %v930, %v929
        %v935 = vpack.i.b16 %v914, %v880
        %v937 = vshrl.u32 %v880, 16
        %v938 = vshrl.u32 %v914, 16
        %v939 = vpack.i.b16 %v938, %v937
        %v943 = vpack.i.b16 %v916, %v882
        %v945 = vshrl.u32 %v882, 16
        %v946 = vshrl.u32 %v916, 16
        %v947 = vpack.i.b16 %v946, %v945
        %v949 = vcombine.low %v919, %v935
        %v951 = vunpack.c.l.s4 1983009808
        %v952 = vunpack.c.0.s8 %v951
        %v953 = vlaneseq
        %v954 = vshrl.u32 %v953, 7
        %v955 = vsub.s32 %v952, %v954
        %v956 = vrot.slane %v949, %v955
        %v957 = vcombine.low %v927, %v943
        %v959 = vunpack.c.l.s4 1983009808
        %v960 = vunpack.c.0.s8 %v959
        %v961 = vlaneseq
        %v962 = vshrl.u32 %v961, 7
        %v963 = vsub.s32 %v960, %v962
        %v964 = vrot.slane %v957, %v963
        %v965 = vcombine.low %v956, %v964
        %v967 = vunpack.c.l.s4 1934713408
        %v968 = vunpack.c.0.s8 %v967
        %v969 = vlaneseq
        %v970 = vshrl.u32 %v969, 7
        %v971 = vsub.s32 %v968, %v970
        %v972 = vrot.slane %v965, %v971
        %v973 = vcombine.high %v972, 0
        %v974 = vcombine.low %v923, %v939
        %v976 = vunpack.c.l.s4 1983009808
        %v977 = vunpack.c.0.s8 %v976
        %v978 = vlaneseq
        %v979 = vshrl.u32 %v978, 7
        %v980 = vsub.s32 %v977, %v979
        %v981 = vrot.slane %v974, %v980
        %v982 = vcombine.low %v931, %v947
        %v984 = vunpack.c.l.s4 1983009808
        %v985 = vunpack.c.0.s8 %v984
        %v986 = vlaneseq
        %v987 = vshrl.u32 %v986, 7
        %v988 = vsub.s32 %v985, %v987
        %v989 = vrot.slane %v982, %v988
        %v990 = vcombine.low %v981, %v989
        %v992 = vunpack.c.l.s4 1934713408
        %v993 = vunpack.c.0.s8 %v992
        %v994 = vlaneseq
        %v995 = vshrl.u32 %v994, 7
        %v996 = vsub.s32 %v993, %v995
        %v997 = vrot.slane %v990, %v996
        %v998 = vcombine.high %v997, 0
        %v1001 = vpack.i.b16 %v997, %v972
        %v1003 = vshrl.u32 %v972, 16
        %v1004 = vshrl.u32 %v997, 16
        %v1005 = vpack.i.b16 %v1004, %v1003
        %v1009 = vpack.i.b16 %v998, %v973
        %v1011 = vshrl.u32 %v973, 16
        %v1012 = vshrl.u32 %v998, 16
        %v1013 = vpack.i.b16 %v1012, %v1011
        %1015 = vst.msk [vmem:[%s384] sm:$0xf] %vm658, %v1001
        %1016 = vst.msk [vmem:[%s384 + $0x4] sm:$0xf] %vm658, %v1005
        %1017 = vst.msk [vmem:[%s384 + $0x8] sm:$0xf] %vm658, %v1009
        %1018 = vst.msk [vmem:[%s384 + $0xc] sm:$0xf] %vm658, %v1013
        %s1019 = sand.u32 %s164, 1
        %s1020 = scalar_lea.sflag [#allocation4], %s1019
        %s1021 = sand.u32 %s164, 1
        %s1022 = smul.addr %s1021, 16
        %s1023 = scalar_lea.vmem [#allocation11], %s1022
        %s1024 = sand.u32 %s30, 1
        %s1025 = scalar_lea.sflag [#allocation13], %s1024
        %s1026 = sand.u32 %s192, 1
        %s1027 = smul.addr %s1026, 16
        %s1028 = scalar_lea.vmem [#allocation12], %s1027
        %s1029 = sand.u32 %s30, 1
        %s1030 = scalar_lea.sflag [#allocation13], %s1029
        %s1031 = sand.u32 %s220, 1
        %s1032 = smul.addr %s1031, 16
        %s1033 = scalar_lea.vmem [#allocation14], %s1032
        // Predicated region
        $region61: #{tpu_custom_call.1} parent=39 // pred_check
          %p1034 = pneg %p174
        $region62: #{tpu_custom_call.1} parent=39 // pred_check_branch
          %1036 = sbr.rel (%p1034) target = $region64
        $region63: #{tpu_custom_call.1} parent=39 // pred_region
          %s1038 = ssub.s32 256, 256
          %1039 = vsyncadd %s1020, %s1038
          %s1040 = smul.addr %s34, 4
          %s1041 = sadd.s32 %s35, %s1040
          %s1042 = smul.addr %s1041, 64
          %s1043 = scalar_lea.hbm %s5, %s1042
          %s1044 = sshll.u32 %s1023, 4
          %s1045 = int_to_ptr.vmem [resolvable:$true] %s1044
          %1050 = dma.vmem_to_hbm [thread:$0]  %s1045, 256, %s1043, %s1020, 64, 64, 4
        $region64: #{tpu_custom_call.1} parent=39 // pred_fallthru
          _
        // Predicated region
        $region65: #{tpu_custom_call.1} parent=39 // pred_check
          %p1051 = pneg %p202
        $region66: #{tpu_custom_call.1} parent=39 // pred_check_branch
          %1053 = sbr.rel (%p1051) target = $region68
        $region67: #{tpu_custom_call.1} parent=39 // pred_region
          %s1055 = ssub.s32 256, 256
          %1056 = vsyncadd %s1025, %s1055
          %s1057 = smul.addr %s34, 4
          %s1058 = sadd.s32 %s35, %s1057
          %s1059 = smul.addr %s1058, 64
          %s1060 = scalar_lea.hbm %s6, %s1059
          %s1061 = sshll.u32 %s1028, 4
          %s1062 = int_to_ptr.vmem [resolvable:$true] %s1061
          %1067 = dma.vmem_to_hbm [thread:$0]  %s1062, 256, %s1060, %s1025, 64, 64, 4
        $region68: #{tpu_custom_call.1} parent=39 // pred_fallthru
          _
        // Predicated region
        $region69: #{tpu_custom_call.1} parent=39 // pred_check
          %p1068 = pneg %p230
        $region70: #{tpu_custom_call.1} parent=39 // pred_check_branch
          %1070 = sbr.rel (%p1068) target = $region72
        $region71: #{tpu_custom_call.1} parent=39 // pred_region
          %s1072 = ssub.s32 256, 256
          %1073 = vsyncadd %s1030, %s1072
          %s1074 = smul.addr %s34, 4
          %s1075 = sadd.s32 %s35, %s1074
          %s1076 = smul.addr %s1075, 64
          %s1077 = scalar_lea.hbm %s7, %s1076
          %s1078 = sshll.u32 %s1033, 4
          %s1079 = int_to_ptr.vmem [resolvable:$true] %s1078
          %1084 = dma.vmem_to_hbm [thread:$0]  %s1079, 256, %s1077, %s1030, 64, 64, 4
        $region72: #{tpu_custom_call.1} parent=39 // pred_fallthru
          _
      $region40: #{tpu_custom_call.1} parent=5 // pred_fallthru
        _
      %p1085 = scmp.le.s32.totalorder 2, %s25
      // Predicated region
      $region73: #{tpu_custom_call.1} parent=5 // pred_check
        %p1086 = pneg %p1085
      $region74: #{tpu_custom_call.1} parent=5 // pred_check_branch
        %1088 = sbr.rel (%p1086) target = $region76
      $region75: #{tpu_custom_call.1} parent=5 // pred_region
        %s1089 = ssub.s32 %s25, 2
        // Predicated region
        $region77: #{tpu_custom_call.1} parent=75 // pred_check
          %p1090 = pneg %p180
        $region78: #{tpu_custom_call.1} parent=75 // pred_check_branch
          %1092 = sbr.rel (%p1090) target = $region80
        $region79: #{tpu_custom_call.1} parent=75 // pred_region
          %s1093 = sand.u32 %s165, 1
          %s1094 = scalar_lea.sflag [#allocation4], %s1093
          %s1095 = sand.u32 %s165, 1
          %s1096 = smul.addr %s1095, 16
          %s1097 = scalar_lea.vmem [#allocation11], %s1096
          %1098 = dma.done %s1094, 256
        $region80: #{tpu_custom_call.1} parent=75 // pred_fallthru
          _
        // Predicated region
        $region81: #{tpu_custom_call.1} parent=75 // pred_check
          %p1099 = pneg %p208
        $region82: #{tpu_custom_call.1} parent=75 // pred_check_branch
          %1101 = sbr.rel (%p1099) target = $region84
        $region83: #{tpu_custom_call.1} parent=75 // pred_region
          %s1102 = sand.u32 %s31, 1
          %s1103 = scalar_lea.sflag [#allocation13], %s1102
          %s1104 = sand.u32 %s193, 1
          %s1105 = smul.addr %s1104, 16
          %s1106 = scalar_lea.vmem [#allocation12], %s1105
          %1107 = dma.done %s1103, 256
        $region84: #{tpu_custom_call.1} parent=75 // pred_fallthru
          _
        // Predicated region
        $region85: #{tpu_custom_call.1} parent=75 // pred_check
          %p1108 = pneg %p236
        $region86: #{tpu_custom_call.1} parent=75 // pred_check_branch
          %1110 = sbr.rel (%p1108) target = $region88
        $region87: #{tpu_custom_call.1} parent=75 // pred_region
          %s1111 = sand.u32 %s31, 1
          %s1112 = scalar_lea.sflag [#allocation13], %s1111
          %s1113 = sand.u32 %s221, 1
          %s1114 = smul.addr %s1113, 16
          %s1115 = scalar_lea.vmem [#allocation14], %s1114
          %1116 = dma.done %s1112, 256
        $region88: #{tpu_custom_call.1} parent=75 // pred_fallthru
          _
      $region76: #{tpu_custom_call.1} parent=5 // pred_fallthru
        _
    $region6: #{tpu_custom_call.1} parent=1 // loop_footer
      %s29 = sadd.s32 1, %s25
    $region7: #{tpu_custom_call.1} parent=1 // loop_footer_branch
      %24 = sbr.rel target = $region3
    $region8: #{tpu_custom_call.1} parent=1 // loop_exit
      _
    %1117 = vsyncpa [#allocation3], 1
    %s1118 = scalar_lea.sflag [#allocation3], 1
    %1119 = vsyncpa %s1118, 1
    %1120 = vsyncpa [#allocation6], 1
    %1121 = vsyncpa [#allocation9], 1
    %1122 = vsyncpa [#allocation4], 1
    %s1123 = scalar_lea.sflag [#allocation4], 1
    %1124 = vsyncpa %s1123, 1
    %1125 = vsyncpa [#allocation13], 1
    %s1126 = scalar_lea.sflag [#allocation13], 1
    %1127 = vsyncpa %s1126, 1

</llo_original>
